<compile_context>
chip_gen: v5e
topology: v5e:2x2
jax: 0.10.0
libtpu: 0.0.40
codegen_flags: <defaults>
</compile_context>

<pallas_src>
import jax
import jax.numpy as jnp
from jax.experimental import pallas as pl
from jax.experimental.pallas import tpu as pltpu


_LANES = 1024      # lane-dense last dim (multiple of 128)
_TILE_ROWS = 512   # rows per tile (multiple of 8); 512*1024*4 B = 2 MiB/tile


def _intify_kernel(x_ref, o_ref):
    # elementwise: truncate toward zero via int32 cast, then back to float32
    o_ref[...] = x_ref[...].astype(jnp.int32).astype(jnp.float32)


def intify_scaled(x: jax.Array) -> jax.Array:
    """Pallas equivalent of IntifyScaled.forward: x.int().float()."""
    orig_shape = x.shape
    if x.dtype != jnp.float32:
        x = x.astype(jnp.float32)

    total = x.size
    flat = x.reshape(-1)

    # Lane-dense slab: (rows, _LANES), _LANES a multiple of 128.
    rows = pl.cdiv(total, _LANES)
    if rows <= _TILE_ROWS:
        # Single row-tile: block equals the full rows extent (always legal).
        block_rows = rows
    else:
        block_rows = _TILE_ROWS
        rows = pl.cdiv(rows, _TILE_ROWS) * _TILE_ROWS  # pad rows to tile multiple

    padded_total = rows * _LANES
    if padded_total != total:
        flat = jnp.pad(flat, (0, padded_total - total))
    x2d = flat.reshape(rows, _LANES)

    out2d = pl.pallas_call(
        _intify_kernel,
        out_shape=jax.ShapeDtypeStruct((rows, _LANES), jnp.float32),
        grid=(rows // block_rows,),
        in_specs=[pl.BlockSpec((block_rows, _LANES), lambda i: (i, 0))],
        out_specs=pl.BlockSpec((block_rows, _LANES), lambda i: (i, 0)),
        compiler_params=pltpu.CompilerParams(
            dimension_semantics=("parallel",),
        ),
    )(x2d)

    out = out2d.reshape(-1)
    if padded_total != total:
        out = out[:total]
    return out.reshape(orig_shape)
    # TODO(synk): .requires_grad_() has no JAX equivalent (autograd flag only).


if __name__ == "__main__":
    key = jax.random.PRNGKey(0)
    # Small NCHW input consistent with typical usage: batch=2, C=4, H=W=16.
    x = jax.random.normal(key, (2, 4, 16, 16), dtype=jnp.float32) * 5.0

    out = intify_scaled(x)
    jax.block_until_ready(out)

    # Reference check: truncation toward zero, back to float32.
    # (In-range values only: int32 cast vs trunc differ for |x| >= 2^31 / NaN / Inf,
    #  matching PyTorch .int() behavior.)
    ref = jnp.trunc(x).astype(jnp.float32)
    assert out.dtype == jnp.float32
    assert out.shape == x.shape
    assert bool(jnp.all(out == ref))

    print("KERNEL_OK")
</pallas_src>

<mosaic_0001>
module attributes {stable_mosaic.version = 11 : i64} {
  func.func @_intify_kernel(%arg0: i32, %arg1: memref<2x1024xf32, #tpu.memory_space<vmem>>, %arg2: memref<2x1024xf32, #tpu.memory_space<vmem>>) attributes {dimension_semantics = [#tpu.dimension_semantics<parallel>], iteration_bounds = array<i64: 1>, scalar_prefetch = 0 : i64, scratch_operands = 0 : i64, tpu.core_type = #tpu.core_type<tc>, window_params = [{transform_indices = @transform_0, window_bounds = array<i64: 2, 1024>}, {transform_indices = @transform_1, window_bounds = array<i64: 2, 1024>}]} {
    %c0 = arith.constant 0 : index
    %c0_0 = arith.constant 0 : index
    %0 = vector.load %arg1[%c0, %c0_0] : memref<2x1024xf32, #tpu.memory_space<vmem>>, vector<2x1024xf32>
    %1 = arith.fptosi %0 : vector<2x1024xf32> to vector<2x1024xi32>
    %2 = arith.sitofp %1 : vector<2x1024xi32> to vector<2x1024xf32>
    %c0_1 = arith.constant 0 : index
    %c0_2 = arith.constant 0 : index
    %3 = vector.load %arg2[%c0_1, %c0_2] : memref<2x1024xf32, #tpu.memory_space<vmem>>, vector<2x1024xf32>
    tpu.vector_store %arg2[%c0_1, %c0_2], %2 {strides = array<i32>} : memref<2x1024xf32, #tpu.memory_space<vmem>>, vector<2x1024xf32>,
    return
  }
  func.func @transform_0(%arg0: i32) -> (i32, i32) {
    %c0_i32 = arith.constant 0 : i32
    %c0_i32_0 = arith.constant 0 : i32
    return %arg0, %c0_i32 : i32, i32
  }
  func.func @transform_1(%arg0: i32) -> (i32, i32) {
    %c0_i32 = arith.constant 0 : i32
    %c0_i32_0 = arith.constant 0 : i32
    return %arg0, %c0_i32 : i32, i32
  }
}

</mosaic_0001>

<llo_original>
// kernel: tpu_custom_call.1
$region0: #{tpu_custom_call.1}
  #allocation0 [shape = 'u32[]', space=smem, size = 0x4, offset = 0x4, fixed_abs, tag = 'smem constant byte address 0x4 - core index']
  #allocation1 [shape = 'u32[72,128]{1,0:T(1,128)}', space=vmem, size = 0x9000, scoped, tag = 'internal scratch']
  %s0 = inlined_call_operand.hbm [shape: f32[2,1024], index: 0, kind: input, shape index: {}]
  %s1 = inlined_call_operand.hbm [shape: f32[2,1024], index: 1, kind: output, shape index: {}]
  %s2 = sld [smem:[#allocation0]]
  $region18: #{tpu_custom_call.1} parent=0
    _
  %s4 = ssub.s32 1, %s2
  %s5 = scalar_select 0, %s4, %s2
  $region1: #{tpu_custom_call.1} parent=0
    #allocation2 [shape = 'u8[8192]{0}', space=vmem, size = 0x2000, scoped, tag = 'input window, operand 0, single buffered']
    #allocation3 [shape = 's32[1]{0}', space=sflag, size = 0x4, scoped, tag = 'scoped memory for tpu_custom_call.1']
    #allocation4 [shape = 's32[1]{0}', space=sflag, size = 0x4, scoped, tag = 'scoped memory for tpu_custom_call.1']
    #allocation5 [shape = 'u8[8192]{0}', space=vmem, size = 0x2000, scoped, tag = 'output window, operand 0, single buffered']
    %6 = vsyncpa [#allocation3], 0
    %7 = vsyncpa [#allocation4], 0
    // Predicated region
    $region2: #{tpu_custom_call.1} parent=1 // pred_check
      _
    $region3: #{tpu_custom_call.1} parent=1 // pred_check_branch
      %9 = sbr.rel (0) target = $region5
    $region4: #{tpu_custom_call.1} parent=1 // pred_region
      %11 = vsyncadd [#allocation3], 0
      %s13 = sshll.u32 %s0, 4
      %s14 = int_to_ptr.hbm [resolvable:$true] %s13
      %s15 = sshll.u32 [#allocation2], 4
      %s16 = int_to_ptr.vmem [resolvable:$true] %s15
      %18 = dma.hbm_to_vmem [thread:$0]  %s14, 256, %s16, [#allocation3]
    $region5: #{tpu_custom_call.1} parent=1 // pred_fallthru
      _
    // Predicated region
    $region6: #{tpu_custom_call.1} parent=1 // pred_check
      _
    $region7: #{tpu_custom_call.1} parent=1 // pred_check_branch
      %20 = sbr.rel (0) target = $region9
    $region8: #{tpu_custom_call.1} parent=1 // pred_region
      %22 = dma.done [#allocation3], 256
    $region9: #{tpu_custom_call.1} parent=1 // pred_fallthru
      _
    %v23 = vld [vmem:[#allocation2] sm:$0xff]
    %v24 = vld [vmem:[#allocation2 + $0x8] sm:$0xff]
    %v25 = vcvt.f32.s32.to.zero.pseudo %v23
    %v26 = vcvt.f32.s32.to.zero.pseudo %v24
    %v27 = vcvt.s32.f32 %v25
    %v28 = vcvt.s32.f32 %v26
    %29 = vst [vmem:[#allocation5] sm:$0xff] %v27
    %30 = vst [vmem:[#allocation5 + $0x8] sm:$0xff] %v28
    // Predicated region
    $region10: #{tpu_custom_call.1} parent=1 // pred_check
      _
    $region11: #{tpu_custom_call.1} parent=1 // pred_check_branch
      %32 = sbr.rel (0) target = $region13
    $region12: #{tpu_custom_call.1} parent=1 // pred_region
      %34 = vsyncadd [#allocation4], 0
      %s36 = sshll.u32 [#allocation5], 4
      %s37 = int_to_ptr.vmem [resolvable:$true] %s36
      %s38 = sshll.u32 %s1, 4
      %s39 = int_to_ptr.hbm [resolvable:$true] %s38
      %41 = dma.vmem_to_hbm [thread:$0]  %s37, 256, %s39, [#allocation4]
    $region13: #{tpu_custom_call.1} parent=1 // pred_fallthru
      _
    // Predicated region
    $region14: #{tpu_custom_call.1} parent=1 // pred_check
      _
    $region15: #{tpu_custom_call.1} parent=1 // pred_check_branch
      %43 = sbr.rel (0) target = $region17
    $region16: #{tpu_custom_call.1} parent=1 // pred_region
      %45 = dma.done [#allocation4], 256
    $region17: #{tpu_custom_call.1} parent=1 // pred_fallthru
      _
    %46 = vsyncpa [#allocation3], 1
    %47 = vsyncpa [#allocation4], 1

</llo_original>
